<compile_context>
chip_gen: v7x
topology: tpu7x:2x2x1
jax: 0.10.0
libtpu: 0.0.40
codegen_flags: <defaults>
</compile_context>

<pallas_src>
import jax
import jax.numpy as jnp
from jax.experimental import pallas as pl
from jax.experimental.pallas import tpu as pltpu


# --------------------------------------------------------------------------- utils
def _round_up(x, m):
    return ((x + m - 1) // m) * m


def _fold_bn(bn, conv_bias=None, eps=1e-5):
    """Fold inference-mode BatchNorm (+ optional conv bias) into (scale, shift)."""
    inv = 1.0 / jnp.sqrt(bn["var"] + eps)
    scale = bn["gamma"] * inv
    shift = bn["beta"] - bn["mean"] * scale
    if conv_bias is not None:
        shift = shift + conv_bias * scale
    return scale, shift


def _hswish(y):
    return y * (jnp.clip(y + 3.0, 0.0, 6.0) * (1.0 / 6.0))


def _sigmoid(y):
    # TODO(synk): approx=True routes the divide to the idle EUP slot; kept exact here
    # to preserve tight (1e-3) parity with the f32 reference.
    return pl.reciprocal(1.0 + jnp.exp(-y), approx=False)


# ------------------------------------------------ expand 1x1 conv + BN + ReLU6 (MXU)
def _expand_kernel(x_ref, w_ref, s_ref, b_ref, o_ref):
    acc = jnp.dot(x_ref[...], w_ref[...], preferred_element_type=jnp.float32)
    y = jnp.clip(acc * s_ref[...] + b_ref[...], 0.0, 6.0)          # folded BN + ReLU6
    o_ref[...] = y.astype(o_ref.dtype)


def expand_conv_bn_relu6(x2d, w, scale, shift, row_tile=512):
    """relu6((x2d @ w) * scale + shift);  x2d: (P, Cin), w: (Cin, Cout)."""
    P, Cin = x2d.shape
    Cout = w.shape[1]
    # Big row tiles for realistic P (fewer grid steps, better DMA efficiency) but keep
    # >= 2 grid steps when possible so both v7x TensorCores get work.
    row_tile = min(row_tile, max(8, _round_up((P + 1) // 2, 8)))
    Pp = _round_up(P, row_tile)
    if Pp != P:
        x2d = jnp.pad(x2d, ((0, Pp - P), (0, 0)))
    s2 = scale.reshape(1, Cout).astype(jnp.float32)
    b2 = shift.reshape(1, Cout).astype(jnp.float32)
    # TODO(synk): store bf16 activations (v6e/v7x) to halve stage-boundary HBM traffic.
    cost = pl.CostEstimate(flops=2 * Pp * Cin * Cout, transcendentals=0,
                           bytes_accessed=4 * (Pp * Cin + Cin * Cout + Pp * Cout))
    out = pl.pallas_call(
        _expand_kernel,
        out_shape=jax.ShapeDtypeStruct((Pp, Cout), jnp.float32),
        grid=(Pp // row_tile,),
        in_specs=[pl.BlockSpec((row_tile, Cin), lambda i: (i, 0)),
                  pl.BlockSpec((Cin, Cout), lambda i: (0, 0)),
                  pl.BlockSpec((1, Cout), lambda i: (0, 0)),
                  pl.BlockSpec((1, Cout), lambda i: (0, 0))],
        out_specs=pl.BlockSpec((row_tile, Cout), lambda i: (i, 0)),
        compiler_params=pltpu.CompilerParams(dimension_semantics=("parallel",)),
        cost_estimate=cost,
    )(x2d, w, s2, b2)
    return out[:P]


# ------------------- depthwise 3x3 + BN + ReLU6 (+ fused CoordAtt dual avg-pooling)
def _make_dw_kernel(fuse_pool):
    def kernel(x_ref, w_ref, s_ref, b_ref, *out_and_scratch):
        if fuse_pool:
            o_ref, oh_ref, ow_ref, xp_ref = out_and_scratch
        else:
            o_ref, xp_ref = out_and_scratch
        H, W, C = o_ref.shape[1], o_ref.shape[2], o_ref.shape[3]
        # Build the 3x3 zero halo in a VMEM scratch — no wrapper-side jnp.pad, so h1
        # is never duplicated in HBM.
        xp_ref[...] = jnp.zeros_like(xp_ref)
        xp_ref[1:H + 1, 1:W + 1, :] = x_ref[0]
        xp = xp_ref[...].astype(jnp.float32)           # (H+2, W+2, C)
        w = w_ref[...].astype(jnp.float32)              # (3, 3, C)
        acc = None
        # TODO(synk): route the dj=1,2 W-offsets through pltpu.roll (XLU slot) instead
        # of sublane-misaligned slices; keep only H-offset slicing.
        for di in range(3):                              # 9 taps, fully unrolled
            for dj in range(3):
                tap = xp[di:di + H, dj:dj + W, :] * w[di, dj, :]
                acc = tap if acc is None else acc + tap
        y = jnp.clip(acc * s_ref[...] + b_ref[...], 0.0, 6.0)      # folded BN + ReLU6
        o_ref[0] = y.astype(o_ref.dtype)
        if fuse_pool:
            # CoordAtt pooling fused in the epilogue while h2 is resident in VMEM.
            oh_ref[0] = (jnp.sum(y, axis=1) * (1.0 / W)).astype(oh_ref.dtype)  # mean over W
            ow_ref[0] = (jnp.sum(y, axis=0) * (1.0 / H)).astype(ow_ref.dtype)  # mean over H
    return kernel


def dw_conv3x3_bn_relu6(x_nhwc, w33c, scale, shift, stride=1, fuse_pool=False):
    N, H, W, C = x_nhwc.shape
    s2 = scale.reshape(1, C).astype(jnp.float32)
    b2 = shift.reshape(1, C).astype(jnp.float32)
    if fuse_pool:
        out_shape = (jax.ShapeDtypeStruct((N, H, W, C), jnp.float32),
                     jax.ShapeDtypeStruct((N, H, C), jnp.float32),
                     jax.ShapeDtypeStruct((N, W, C), jnp.float32))
        out_specs = (pl.BlockSpec((1, H, W, C), lambda n: (n, 0, 0, 0)),
                     pl.BlockSpec((1, H, C), lambda n: (n, 0, 0)),
                     pl.BlockSpec((1, W, C), lambda n: (n, 0, 0)))
    else:
        out_shape = jax.ShapeDtypeStruct((N, H, W, C), jnp.float32)
        out_specs = pl.BlockSpec((1, H, W, C), lambda n: (n, 0, 0, 0))
    # TODO(synk): for realistic H*W*C, tile the grid over row bands (multiple-of-8 rows
    # + 2-row halo) and set vmem_limit_bytes explicitly to fit v7x's 64 MiB VMEM.
    res = pl.pallas_call(
        _make_dw_kernel(fuse_pool),
        out_shape=out_shape,
        grid=(N,),
        in_specs=[pl.BlockSpec((1, H, W, C), lambda n: (n, 0, 0, 0)),
                  pl.BlockSpec((3, 3, C), lambda n: (0, 0, 0)),
                  pl.BlockSpec((1, C), lambda n: (0, 0)),
                  pl.BlockSpec((1, C), lambda n: (0, 0))],
        out_specs=out_specs,
        scratch_shapes=[pltpu.VMEM((H + 2, W + 2, C), jnp.float32)],
        compiler_params=pltpu.CompilerParams(dimension_semantics=("parallel",)),
    )(x_nhwc, w33c, s2, b2)
    if stride == 2:
        # TODO(synk): compute the strided output directly in-kernel (even-offset taps)
        # to cut 4x VPU work + output DMA; subsampling stride-1 is mathematically
        # identical for k=3 / pad=1 (callers must not fuse pooling on this path).
        res = res[:, ::2, ::2, :]
    return res


# ------------------ CoordAtt pooling fallback kernel (only used on the stride-2 path)
def _pool_kernel(x_ref, oh_ref, ow_ref):
    x = x_ref[0].astype(jnp.float32)                     # (H, W, C)
    oh_ref[0] = (jnp.sum(x, axis=1) * (1.0 / x.shape[1])).astype(oh_ref.dtype)
    ow_ref[0] = (jnp.sum(x, axis=0) * (1.0 / x.shape[0])).astype(ow_ref.dtype)


def coord_pool(x_nhwc):
    N, H, W, C = x_nhwc.shape
    return pl.pallas_call(
        _pool_kernel,
        out_shape=(jax.ShapeDtypeStruct((N, H, C), jnp.float32),
                   jax.ShapeDtypeStruct((N, W, C), jnp.float32)),
        grid=(N,),
        in_specs=[pl.BlockSpec((1, H, W, C), lambda n: (n, 0, 0, 0))],
        out_specs=(pl.BlockSpec((1, H, C), lambda n: (n, 0, 0)),
                   pl.BlockSpec((1, W, C), lambda n: (n, 0, 0))),
        compiler_params=pltpu.CompilerParams(dimension_semantics=("parallel",)),
    )(x_nhwc)


# --------------- CoordAtt MLP: shared conv1+BN+h_swish, conv2/conv3+sigmoid, one call
def _ca_mlp_kernel(xh_ref, xw_ref, w1_ref, s1_ref, b1_ref,
                   w2_ref, b2_ref, w3_ref, b3_ref, gh_ref, gw_ref):
    N, H, C = gh_ref.shape
    W = gw_ref.shape[1]
    w1 = w1_ref[...]

    def shared(v_ref, rows):
        v = v_ref[...].reshape(N * rows, v_ref.shape[2])
        y = jnp.dot(v, w1, preferred_element_type=jnp.float32)
        return _hswish(y * s1_ref[...] + b1_ref[...])     # (N*rows, mip)

    # cat([x_h, x_w]) -> conv1 is mathematically identical to applying conv1 separately,
    # so no in-kernel concat is needed.
    yh = shared(xh_ref, H)
    yw = shared(xw_ref, W)

    def gate(y, w_ref, b_ref, rows):
        z = jnp.dot(y, w_ref[...], preferred_element_type=jnp.float32) + b_ref[...]
        return _sigmoid(z).reshape(N, rows, C)

    gh_ref[...] = gate(yh, w2_ref, b2_ref, H).astype(gh_ref.dtype)
    gw_ref[...] = gate(yw, w3_ref, b3_ref, W).astype(gw_ref.dtype)


def ca_mlp(xh_pool, xw_pool, w1, s1, b1, w2, b2, w3, b3):
    """All three tiny CoordAtt 1x1 convs in ONE gridless pallas_call, fully in VMEM."""
    N, H, C = xh_pool.shape
    W = xw_pool.shape[1]
    mip = w1.shape[1]
    row = lambda v, c: v.reshape(1, c).astype(jnp.float32)
    return pl.pallas_call(
        _ca_mlp_kernel,
        out_shape=(jax.ShapeDtypeStruct((N, H, C), jnp.float32),
                   jax.ShapeDtypeStruct((N, W, C), jnp.float32)),
    )(xh_pool, xw_pool, w1, row(s1, mip), row(b1, mip), w2, row(b2, C), w3, row(b3, C))


# ----- projection: CoordAtt gating (prologue) + 1x1 conv + BN + residual (epilogue)
def _make_proj_kernel(has_gate, has_residual):
    def kernel(*refs):
        it = iter(refs)
        x_ref = next(it)
        gh_ref = next(it) if has_gate else None
        gw_ref = next(it) if has_gate else None
        w_ref, s_ref, b_ref = next(it), next(it), next(it)
        r_ref = next(it) if has_residual else None
        o_ref = next(it)
        H, W, Cout = o_ref.shape[1], o_ref.shape[2], o_ref.shape[3]
        Cin = x_ref.shape[3]
        x = x_ref[0].astype(jnp.float32)                    # (H, W, Cin)
        if has_gate:
            # CoordAtt gating fused into the matmul prologue — no separate HBM pass.
            gh = gh_ref[0].astype(jnp.float32)              # (H, Cin), broadcast over W
            gw = gw_ref[0].astype(jnp.float32)              # (W, Cin), broadcast over H
            x = x * gh[:, None, :] * gw[None, :, :]
        acc = jnp.dot(x.reshape(H * W, Cin), w_ref[...],
                      preferred_element_type=jnp.float32)
        y = acc * s_ref[...] + b_ref[...]                   # folded BN
        if has_residual:
            y = y + r_ref[0].astype(jnp.float32).reshape(H * W, Cout)
        o_ref[0] = y.reshape(H, W, Cout).astype(o_ref.dtype)
    return kernel


def proj_conv_bn(x_nhwc, w, scale, shift, gates=None, residual=None):
    N, H, W, Cin = x_nhwc.shape
    Cout = w.shape[1]
    s2 = scale.reshape(1, Cout).astype(jnp.float32)
    b2 = shift.reshape(1, Cout).astype(jnp.float32)
    in_specs = [pl.BlockSpec((1, H, W, Cin), lambda n: (n, 0, 0, 0))]
    args = [x_nhwc]
    if gates is not None:
        gh, gw = gates
        in_specs += [pl.BlockSpec((1, H, Cin), lambda n: (n, 0, 0)),
                     pl.BlockSpec((1, W, Cin), lambda n: (n, 0, 0))]
        args += [gh, gw]
    in_specs += [pl.BlockSpec((Cin, Cout), lambda n: (0, 0)),
                 pl.BlockSpec((1, Cout), lambda n: (0, 0)),
                 pl.BlockSpec((1, Cout), lambda n: (0, 0))]
    args += [w, s2, b2]
    if residual is not None:
        in_specs.append(pl.BlockSpec((1, H, W, Cout), lambda n: (n, 0, 0, 0)))
        args.append(residual)
    cost = pl.CostEstimate(
        flops=2 * N * H * W * Cin * Cout, transcendentals=0,
        bytes_accessed=4 * N * H * W * (Cin + Cout * (2 if residual is not None else 1)))
    return pl.pallas_call(
        _make_proj_kernel(gates is not None, residual is not None),
        out_shape=jax.ShapeDtypeStruct((N, H, W, Cout), jnp.float32),
        grid=(N,),
        in_specs=in_specs,
        out_specs=pl.BlockSpec((1, H, W, Cout), lambda n: (n, 0, 0, 0)),
        compiler_params=pltpu.CompilerParams(dimension_semantics=("parallel",)),
        cost_estimate=cost,
    )(*args)


# --------------------------------------------------------- full module forward pass
def inverted_residual_ca_forward(x_nchw, p, stride, expand_ratio):
    # TODO(synk): fold these NCHW<->NHWC transposes into the first/last kernels, and
    # use a pixels-in-lanes layout for the spatial kernels when C < 128.
    x = jnp.transpose(x_nchw, (0, 2, 3, 1)).astype(jnp.float32)    # NHWC internally
    N, H, W, Cin = x.shape
    oup = p["w_proj"].shape[1]
    use_res = (stride == 1) and (Cin == oup)
    has_ca = expand_ratio != 1

    # ---- expand 1x1 conv + BN + ReLU6 (skipped when expand_ratio == 1)
    if has_ca:
        s1, b1 = _fold_bn(p["bn_exp"])
        hid = p["w_exp"].shape[1]
        h1 = expand_conv_bn_relu6(x.reshape(-1, Cin), p["w_exp"], s1, b1
                                  ).reshape(N, H, W, hid)
    else:
        h1, hid = x, Cin

    # ---- depthwise 3x3 + BN + ReLU6 (+ fused CoordAtt pooling when stride == 1)
    sd, bd = _fold_bn(p["bn_dw"])
    fuse_pool = has_ca and stride == 1
    dw_out = dw_conv3x3_bn_relu6(h1, p["w_dw"], sd, bd, stride=stride,
                                 fuse_pool=fuse_pool)
    if fuse_pool:
        h2, xh_pool, xw_pool = dw_out
    else:
        h2 = dw_out

    # ---- Coordinate Attention gates (only on the expand_ratio != 1 branch)
    gates = None
    if has_ca:
        if not fuse_pool:                      # stride-2: pool the subsampled map
            xh_pool, xw_pool = coord_pool(h2)
        sc1, bc1 = _fold_bn(p["ca_bn1"], conv_bias=p["ca_b1"])
        gh, gw = ca_mlp(xh_pool, xw_pool, p["ca_w1"], sc1, bc1,
                        p["ca_w2"], p["ca_b2"], p["ca_w3"], p["ca_b3"])
        gates = (gh, gw)

    # ---- projection: gating + 1x1 conv + BN + residual, one fused kernel
    sp, bp = _fold_bn(p["bn_proj"])
    out = proj_conv_bn(h2, p["w_proj"], sp, bp, gates=gates,
                       residual=x if use_res else None)
    return jnp.transpose(out, (0, 3, 1, 2))                        # back to NCHW


# ------------------------------------------------------ pure-JAX reference (no Pallas)
def reference_forward(x_nchw, p, stride, expand_ratio):
    x = jnp.transpose(x_nchw, (0, 2, 3, 1)).astype(jnp.float32)
    N, H, W, Cin = x.shape
    oup = p["w_proj"].shape[1]
    use_res = (stride == 1) and (Cin == oup)

    def pw(x2d, w, s, b):
        return jnp.dot(x2d, w, precision=jax.lax.Precision.HIGHEST) * s + b

    if expand_ratio != 1:
        s1, b1 = _fold_bn(p["bn_exp"])
        hid = p["w_exp"].shape[1]
        h1 = jnp.clip(pw(x.reshape(-1, Cin), p["w_exp"], s1, b1), 0.0, 6.0)
        h1 = h1.reshape(N, H, W, hid)
    else:
        h1, hid = x, Cin

    sd, bd = _fold_bn(p["bn_dw"])
    xp = jnp.pad(h1, ((0, 0), (1, 1), (1, 1), (0, 0)))
    acc = jnp.zeros((N, H, W, hid), jnp.float32)
    for di in range(3):
        for dj in range(3):
            acc = acc + xp[:, di:di + H, dj:dj + W, :] * p["w_dw"][di, dj, :]
    h2 = jnp.clip(acc * sd + bd, 0.0, 6.0)
    if stride == 2:
        h2 = h2[:, ::2, ::2, :]
    N2, H2, W2, _ = h2.shape

    if expand_ratio != 1:
        xh = jnp.mean(h2, axis=2)                                  # pool over W
        xw = jnp.mean(h2, axis=1)                                  # pool over H
        pooled = jnp.concatenate([xh, xw], axis=1)
        sc1, bc1 = _fold_bn(p["ca_bn1"], conv_bias=p["ca_b1"])
        mip = p["ca_w1"].shape[1]
        y = pw(pooled.reshape(-1, hid), p["ca_w1"], sc1, bc1)
        y = (y * jnp.clip(y + 3.0, 0.0, 6.0) / 6.0).reshape(N2, H2 + W2, mip)
        yh, yw = y[:, :H2, :], y[:, H2:, :]
        gh = jax.nn.sigmoid(pw(yh.reshape(-1, mip), p["ca_w2"], 1.0, p["ca_b2"])
                            ).reshape(N2, H2, hid)
        gw = jax.nn.sigmoid(pw(yw.reshape(-1, mip), p["ca_w3"], 1.0, p["ca_b3"])
                            ).reshape(N2, W2, hid)
        h3 = h2 * gh[:, :, None, :] * gw[:, None, :, :]
    else:
        h3 = h2

    sp, bp = _fold_bn(p["bn_proj"])
    out = pw(h3.reshape(-1, hid), p["w_proj"], sp, bp).reshape(N2, H2, W2, oup)
    if use_res:
        out = out + x
    return jnp.transpose(out, (0, 3, 1, 2))


# ------------------------------------------------------------------ parameter init
def init_params(key, inp, oup, stride, expand_ratio):
    hid = int(inp * expand_ratio)
    mip = max(8, hid // 32)
    keys = iter(jax.random.split(key, 32))
    nk = lambda: next(keys)

    def conv_w(cin, cout):
        return 0.3 * jax.random.normal(nk(), (cin, cout), jnp.float32)

    def bias(c):
        return 0.1 * jax.random.normal(nk(), (c,), jnp.float32)

    def bn(c):
        return dict(
            gamma=1.0 + 0.1 * jax.random.normal(nk(), (c,), jnp.float32),
            beta=0.1 * jax.random.normal(nk(), (c,), jnp.float32),
            mean=0.1 * jax.random.normal(nk(), (c,), jnp.float32),
            var=0.5 + jnp.abs(jax.random.normal(nk(), (c,), jnp.float32)),
        )

    p = {}
    if expand_ratio != 1:
        p["w_exp"] = conv_w(inp, hid)
        p["bn_exp"] = bn(hid)
        p["ca_w1"] = conv_w(hid, mip)
        p["ca_b1"] = bias(mip)
        p["ca_bn1"] = bn(mip)
        p["ca_w2"] = conv_w(mip, hid)
        p["ca_b2"] = bias(hid)
        p["ca_w3"] = conv_w(mip, hid)
        p["ca_b3"] = bias(hid)
    p["w_dw"] = 0.3 * jax.random.normal(nk(), (3, 3, hid), jnp.float32)
    p["bn_dw"] = bn(hid)
    p["w_proj"] = conv_w(hid, oup)
    p["bn_proj"] = bn(oup)
    return p


if __name__ == "__main__":
    key = jax.random.PRNGKey(0)
    k_x, k_p = jax.random.split(key)

    N, Cin, H, W = 2, 4, 16, 16
    oup, stride, expand_ratio = 4, 1, 2          # use_res_connect = True, CoordAtt path

    x = jax.random.normal(k_x, (N, Cin, H, W), jnp.float32)
    params = init_params(k_p, Cin, oup, stride, expand_ratio)

    y = jax.block_until_ready(inverted_residual_ca_forward(x, params, stride, expand_ratio))
    y_ref = jax.block_until_ready(reference_forward(x, params, stride, expand_ratio))

    assert y.shape == (N, oup, H, W), y.shape
    assert y.dtype == jnp.float32
    max_err = float(jnp.max(jnp.abs(y - y_ref)))
    assert jnp.allclose(y, y_ref, atol=1e-3, rtol=1e-3), \
        f"mismatch vs reference, max abs err {max_err}"
    print("KERNEL_OK")
</pallas_src>

<mosaic_0001>
module attributes {stable_mosaic.version = 11 : i64} {
  func.func @_expand_kernel(%arg0: i32, %arg1: memref<256x4xf32, #tpu.memory_space<vmem>>, %arg2: memref<4x8xf32, #tpu.memory_space<vmem>>, %arg3: memref<1x8xf32, #tpu.memory_space<vmem>>, %arg4: memref<1x8xf32, #tpu.memory_space<vmem>>, %arg5: memref<256x8xf32, #tpu.memory_space<vmem>>) attributes {dimension_semantics = [#tpu.dimension_semantics<parallel>], iteration_bounds = array<i64: 2>, scalar_prefetch = 0 : i64, scratch_operands = 0 : i64, tpu.core_type = #tpu.core_type<tc>, window_params = [{transform_indices = @transform_0, window_bounds = array<i64: 256, 4>}, {pipeline_mode = #tpu.pipeline_mode<synchronous>, transform_indices = @transform_1, window_bounds = array<i64: 4, 8>}, {pipeline_mode = #tpu.pipeline_mode<synchronous>, transform_indices = @transform_2, window_bounds = array<i64: 1, 8>}, {pipeline_mode = #tpu.pipeline_mode<synchronous>, transform_indices = @transform_3, window_bounds = array<i64: 1, 8>}, {transform_indices = @transform_4, window_bounds = array<i64: 256, 8>}]} {
    %c0 = arith.constant 0 : index
    %c0_0 = arith.constant 0 : index
    %0 = vector.load %arg1[%c0, %c0_0] : memref<256x4xf32, #tpu.memory_space<vmem>>, vector<256x4xf32>
    %c0_1 = arith.constant 0 : index
    %c0_2 = arith.constant 0 : index
    %1 = vector.load %arg2[%c0_1, %c0_2] : memref<4x8xf32, #tpu.memory_space<vmem>>, vector<4x8xf32>
    %cst = arith.constant dense<0.000000e+00> : vector<256x8xf32>
    %2 = tpu.matmul %0, %1, %cst {dimension_numbers = #tpu.dot_dimension_numbers<[1], [0], [0], [1], [0, 0, 1, 1], [], []>} : vector<256x4xf32>, vector<4x8xf32>, vector<256x8xf32> -> vector<256x8xf32>
    %c0_3 = arith.constant 0 : index
    %c0_4 = arith.constant 0 : index
    %3 = vector.load %arg3[%c0_3, %c0_4] : memref<1x8xf32, #tpu.memory_space<vmem>>, vector<1x8xf32>
    %4 = vector.broadcast %3 : vector<1x8xf32> to vector<256x8xf32>
    %5 = arith.mulf %2, %4 : vector<256x8xf32>
    %c0_5 = arith.constant 0 : index
    %c0_6 = arith.constant 0 : index
    %6 = vector.load %arg4[%c0_5, %c0_6] : memref<1x8xf32, #tpu.memory_space<vmem>>, vector<1x8xf32>
    %7 = vector.broadcast %6 : vector<1x8xf32> to vector<256x8xf32>
    %8 = arith.addf %5, %7 : vector<256x8xf32>
    %cst_7 = arith.constant 0.000000e+00 : f32
    %cst_8 = arith.constant 6.000000e+00 : f32
    %9 = vector.broadcast %cst_7 : f32 to vector<256x8xf32>
    %10 = arith.maximumf %9, %8 : vector<256x8xf32>
    %11 = vector.broadcast %cst_8 : f32 to vector<256x8xf32>
    %12 = arith.minimumf %11, %10 : vector<256x8xf32>
    %c0_9 = arith.constant 0 : index
    %c0_10 = arith.constant 0 : index
    %13 = vector.load %arg5[%c0_9, %c0_10] : memref<256x8xf32, #tpu.memory_space<vmem>>, vector<256x8xf32>
    tpu.vector_store %arg5[%c0_9, %c0_10], %12 {strides = array<i32>} : memref<256x8xf32, #tpu.memory_space<vmem>>, vector<256x8xf32>,
    return
  }
  func.func @transform_0(%arg0: i32) -> (i32, i32) {
    %c0_i32 = arith.constant 0 : i32
    %c0_i32_0 = arith.constant 0 : i32
    return %arg0, %c0_i32 : i32, i32
  }
  func.func @transform_1(%arg0: i32) -> (i32, i32) {
    %c0_i32 = arith.constant 0 : i32
    %c0_i32_0 = arith.constant 0 : i32
    %c0_i32_1 = arith.constant 0 : i32
    return %c0_i32, %c0_i32_0 : i32, i32
  }
  func.func @transform_2(%arg0: i32) -> (i32, i32) {
    %c0_i32 = arith.constant 0 : i32
    %c0_i32_0 = arith.constant 0 : i32
    %c0_i32_1 = arith.constant 0 : i32
    return %c0_i32, %c0_i32_0 : i32, i32
  }
  func.func @transform_3(%arg0: i32) -> (i32, i32) {
    %c0_i32 = arith.constant 0 : i32
    %c0_i32_0 = arith.constant 0 : i32
    %c0_i32_1 = arith.constant 0 : i32
    return %c0_i32, %c0_i32_0 : i32, i32
  }
  func.func @transform_4(%arg0: i32) -> (i32, i32) {
    %c0_i32 = arith.constant 0 : i32
    %c0_i32_0 = arith.constant 0 : i32
    return %arg0, %c0_i32 : i32, i32
  }
}

</mosaic_0001>

<llo_original>
// kernel: tpu_custom_call.1
$region0: #{tpu_custom_call.1}
  #allocation0 [shape = 'u32[]', space=smem, size = 0x4, offset = 0x4, fixed_abs, tag = 'smem constant byte address 0x4 - core index']
  #allocation1 [shape = 'u32[144,128]{1,0:T(1,128)}', space=vmem, size = 0x12000, scoped, tag = 'internal scratch']
  %s0 = inlined_call_operand.vmem [shape: f32[512,4], index: 0, kind: input, shape index: {}]
  %s1 = inlined_call_operand.vmem [shape: f32[4,8], index: 1, kind: input, shape index: {}]
  %s2 = inlined_call_operand.vmem [shape: f32[1,8], index: 2, kind: input, shape index: {}]
  %s3 = inlined_call_operand.vmem [shape: f32[1,8], index: 3, kind: input, shape index: {}]
  %s4 = inlined_call_operand.vmem [shape: f32[512,8], index: 4, kind: output, shape index: {}]
  %s5 = sld [smem:[#allocation0]]
  $region49: #{tpu_custom_call.1} parent=0
    _
  %s7 = ssub.s32 1, %s5
  %s8 = scalar_select 0, %s7, %s5
  loop: start=0, step=1, limit=4
  $region2: #{tpu_custom_call.1} parent=0 // loop_pre_header
    _
  $region3: #{tpu_custom_call.1} parent=0 // loop_header
    %s10 = sphi 0, %s14
    %p11 = scmp.ge.s32.totalorder %s10, 4
    %s20 = sphi 0, %s22
    %s23 = sphi 0, %s20
    %s24 = sphi 0, %s23
    %s40 = sphi 0, %s24
    %s44 = sphi 0, %s44
    %s46 = sphi 0, %s44
    %s47 = sphi 0, %s46
    %s61 = sphi 0, %s47
    %s65 = sphi 0, %s65
    %s67 = sphi 0, %s65
    %s68 = sphi 0, %s67
    %s82 = sphi 0, %s68
    %s86 = sphi 0, %s86
    %s88 = sphi 0, %s86
    %s89 = sphi 0, %s88
    %s103 = sphi 0, %s89
    %s109 = sphi 0, %s111
    %s112 = sphi 0, %s109
    %s113 = sphi 0, %s112
    %s129 = sphi 0, %s113
  $region4: #{tpu_custom_call.1} parent=0 // loop_header_branch
    %13 = sbr.rel (%p11) target = $region8
  $region5: #{tpu_custom_call.1} parent=0 // loop_body
    %s15 = ssub.s32 %s10, 1
    %s16 = ssub.s32 %s10, 2
    %s17 = sadd.s32 %s10, 1
    %s18 = ssub.s32 %s10, %s17
    %p19 = scmp.eq.s32.totalorder %s18, 0
    %s21 = sadd.s32 %s20, 1
    %s22 = scalar_select %p19, %s20, %s21
    %p25 = pneg %p19
    %p26 = scmp.eq.s32.totalorder %s10, 1
    %p27 = por %p25, %p26
    %p28 = scmp.ne.s32.totalorder %s20, %s23
    %p29 = scmp.eq.s32.totalorder %s10, 0
    %p30 = por %p28, %p29
    %p31 = scmp.ne.s32.totalorder %s20, %s23
    %p32 = scmp.eq.s32.totalorder %s15, 1
    %p33 = por %p31, %p32
    %p34 = scmp.ne.s32.totalorder %s23, %s24
    %p35 = scmp.eq.s32.totalorder %s15, 0
    %p36 = por %p34, %p35
    %p37 = scmp.ne.s32.totalorder %s23, %s24
    %p38 = scmp.eq.s32.totalorder %s16, 1
    %p39 = por %p37, %p38
    %p41 = scmp.ne.s32.totalorder %s24, %s40
    %p42 = scmp.eq.s32.totalorder %s16, 0
    %p43 = por %p41, %p42
    %s45 = sadd.s32 %s44, 1
    %p48 = scmp.eq.s32.totalorder %s10, 1
    %p49 = scmp.ne.s32.totalorder %s44, %s46
    %p50 = scmp.eq.s32.totalorder %s10, 0
    %p51 = por %p49, %p50
    %p52 = scmp.ne.s32.totalorder %s44, %s46
    %p53 = scmp.eq.s32.totalorder %s15, 1
    %p54 = por %p52, %p53
    %p55 = scmp.ne.s32.totalorder %s46, %s47
    %p56 = scmp.eq.s32.totalorder %s15, 0
    %p57 = por %p55, %p56
    %p58 = scmp.ne.s32.totalorder %s46, %s47
    %p59 = scmp.eq.s32.totalorder %s16, 1
    %p60 = por %p58, %p59
    %p62 = scmp.ne.s32.totalorder %s47, %s61
    %p63 = scmp.eq.s32.totalorder %s16, 0
    %p64 = por %p62, %p63
    %s66 = sadd.s32 %s65, 1
    %p69 = scmp.eq.s32.totalorder %s10, 1
    %p70 = scmp.ne.s32.totalorder %s65, %s67
    %p71 = scmp.eq.s32.totalorder %s10, 0
    %p72 = por %p70, %p71
    %p73 = scmp.ne.s32.totalorder %s65, %s67
    %p74 = scmp.eq.s32.totalorder %s15, 1
    %p75 = por %p73, %p74
    %p76 = scmp.ne.s32.totalorder %s67, %s68
    %p77 = scmp.eq.s32.totalorder %s15, 0
    %p78 = por %p76, %p77
    %p79 = scmp.ne.s32.totalorder %s67, %s68
    %p80 = scmp.eq.s32.totalorder %s16, 1
    %p81 = por %p79, %p80
    %p83 = scmp.ne.s32.totalorder %s68, %s82
    %p84 = scmp.eq.s32.totalorder %s16, 0
    %p85 = por %p83, %p84
    %s87 = sadd.s32 %s86, 1
    %p90 = scmp.eq.s32.totalorder %s10, 1
    %p91 = scmp.ne.s32.totalorder %s86, %s88
    %p92 = scmp.eq.s32.totalorder %s10, 0
    %p93 = por %p91, %p92
    %p94 = scmp.ne.s32.totalorder %s86, %s88
    %p95 = scmp.eq.s32.totalorder %s15, 1
    %p96 = por %p94, %p95
    %p97 = scmp.ne.s32.totalorder %s88, %s89
    %p98 = scmp.eq.s32.totalorder %s15, 0
    %p99 = por %p97, %p98
    %p100 = scmp.ne.s32.totalorder %s88, %s89
    %p101 = scmp.eq.s32.totalorder %s16, 1
    %p102 = por %p100, %p101
    %p104 = scmp.ne.s32.totalorder %s89, %s103
    %p105 = scmp.eq.s32.totalorder %s16, 0
    %p106 = por %p104, %p105
    %s107 = ssub.s32 %s10, %s17
    %p108 = scmp.eq.s32.totalorder %s107, 0
    %s110 = sadd.s32 %s109, 1
    %s111 = scalar_select %p108, %s109, %s110
    %p114 = pneg %p108
    %p115 = scmp.eq.s32.totalorder %s10, 1
    %p116 = por %p114, %p115
    %p117 = scmp.ne.s32.totalorder %s109, %s112
    %p118 = scmp.eq.s32.totalorder %s10, 0
    %p119 = por %p117, %p118
    %p120 = scmp.ne.s32.totalorder %s109, %s112
    %p121 = scmp.eq.s32.totalorder %s15, 1
    %p122 = por %p120, %p121
    %p123 = scmp.ne.s32.totalorder %s112, %s113
    %p124 = scmp.eq.s32.totalorder %s15, 0
    %p125 = por %p123, %p124
    %p126 = scmp.ne.s32.totalorder %s112, %s113
    %p127 = scmp.eq.s32.totalorder %s16, 1
    %p128 = por %p126, %p127
    %p130 = scmp.ne.s32.totalorder %s113, %s129
    %p131 = scmp.eq.s32.totalorder %s16, 0
    %p132 = por %p130, %p131
    %p133 = scmp.le.s32.totalorder 1, %s10
    %p134 = scmp.lt.s32.totalorder %s10, 3
    %p135 = pnand %p133, %p134
    %p136 = pneg %p135
    // Predicated region
    $region9: #{tpu_custom_call.1} parent=5 // pred_check
      _
    $region10: #{tpu_custom_call.1} parent=5 // pred_check_branch
      %138 = sbr.rel (%p135) target = $region12
    $region11: #{tpu_custom_call.1} parent=5 // pred_region
      %s139 = ssub.s32 %s10, 1
      // Predicated region
      $region13: #{tpu_custom_call.1} parent=11 // pred_check
        %p140 = pneg %p57
      $region14: #{tpu_custom_call.1} parent=11 // pred_check_branch
        %142 = sbr.rel (%p140) target = $region16
      $region15: #{tpu_custom_call.1} parent=11 // pred_region
        _
      $region16: #{tpu_custom_call.1} parent=11 // pred_fallthru
        _
      // Predicated region
      $region17: #{tpu_custom_call.1} parent=11 // pred_check
        %p143 = pneg %p78
      $region18: #{tpu_custom_call.1} parent=11 // pred_check_branch
        %145 = sbr.rel (%p143) target = $region20
      $region19: #{tpu_custom_call.1} parent=11 // pred_region
        _
      $region20: #{tpu_custom_call.1} parent=11 // pred_fallthru
        _
      // Predicated region
      $region21: #{tpu_custom_call.1} parent=11 // pred_check
        %p146 = pneg %p99
      $region22: #{tpu_custom_call.1} parent=11 // pred_check_branch
        %148 = sbr.rel (%p146) target = $region24
      $region23: #{tpu_custom_call.1} parent=11 // pred_region
        _
      $region24: #{tpu_custom_call.1} parent=11 // pred_fallthru
        _
    $region12: #{tpu_custom_call.1} parent=5 // pred_fallthru
      _
    %p149 = scmp.lt.s32.totalorder %s10, 2
    // Predicated region
    $region25: #{tpu_custom_call.1} parent=5 // pred_check
      %p150 = pneg %p149
    $region26: #{tpu_custom_call.1} parent=5 // pred_check_branch
      %152 = sbr.rel (%p150) target = $region28
    $region27: #{tpu_custom_call.1} parent=5 // pred_region
      // Predicated region
      $region29: #{tpu_custom_call.1} parent=27 // pred_check
        %p153 = pneg %p30
      $region30: #{tpu_custom_call.1} parent=27 // pred_check_branch
        %155 = sbr.rel (%p153) target = $region32
      $region31: #{tpu_custom_call.1} parent=27 // pred_region
        %s156 = smul.u32 32, %s10
        %p157 = scmp.lt.s32.totalorder %s156, 63
        %s158 = scalar_select %p157, %s156, 63
        %s159 = smul.addr %s158, 8
        %s160 = scalar_lea.vmem %s0, %s159
        %s161 = smul.u32 32, %s10
      $region32: #{tpu_custom_call.1} parent=27 // pred_fallthru
        _
    $region28: #{tpu_custom_call.1} parent=5 // pred_fallthru
      _
    %p162 = scmp.le.s32.totalorder 1, %s10
    %p163 = scmp.lt.s32.totalorder %s10, 3
    %p164 = pnand %p162, %p163
    %p165 = pneg %p164
    // Predicated region
    $region33: #{tpu_custom_call.1} parent=5 // pred_check
      _
    $region34: #{tpu_custom_call.1} parent=5 // pred_check_branch
      %167 = sbr.rel (%p164) target = $region36
    $region35: #{tpu_custom_call.1} parent=5 // pred_region
      %s168 = ssub.s32 %s10, 1
      %s169 = smul.u32 32, %s15
      %p170 = scmp.lt.s32.totalorder %s169, 63
      %s171 = scalar_select %p170, %s169, 63
      %s172 = smul.addr %s171, 8
      %s173 = scalar_lea.vmem %s0, %s172
      %p174 = pneg %p36
      %p175 = pneg %p33
      %p176 = pneg %p57
      %p177 = pneg %p54
      %p178 = pneg %p78
      %p179 = pneg %p75
      %p180 = pneg %p99
      %p181 = pneg %p96
      %p182 = pneg %p125
      %p183 = pneg %p122
      %s184 = smul.u32 32, %s15
      %p185 = scmp.lt.s32.totalorder %s184, 63
      %s186 = scalar_select %p185, %s184, 63
      %s187 = smul.addr %s186, 8
      %s188 = scalar_lea.vmem %s4, %s187
      %s189 = smul.u32 32, %s15
      %p190 = scmp.lt.s32.totalorder %s189, 63
      %s191 = scalar_select %p190, %s189, 63
      %s192 = smul.addr %s191, 8
      %s193 = scalar_lea.vmem %s0, %s192
      %s194 = smul.u32 32, %s15
      %s195 = smul.u32 32, %s15
      %p196 = scmp.lt.s32.totalorder %s195, 63
      %s197 = scalar_select %p196, %s195, 63
      %s198 = smul.addr %s197, 8
      %s199 = scalar_lea.vmem %s4, %s198
      %s200 = smul.u32 32, %s15
      %v201 = vld [vmem:[%s193] sm:$0xff]
      %v202 = vld [vmem:[%s193 + $0x8] sm:$0xff]
      %v203 = vld [vmem:[%s193 + $0x10] sm:$0xff]
      %v204 = vld [vmem:[%s193 + $0x18] sm:$0xff]
      %v205 = vld [vmem:[%s193 + $0x20] sm:$0xff]
      %v206 = vld [vmem:[%s193 + $0x28] sm:$0xff]
      %v207 = vld [vmem:[%s193 + $0x30] sm:$0xff]
      %v208 = vld [vmem:[%s193 + $0x38] sm:$0xff]
      %v209 = vld [vmem:[%s193 + $0x40] sm:$0xff]
      %v210 = vld [vmem:[%s193 + $0x48] sm:$0xff]
      %v211 = vld [vmem:[%s193 + $0x50] sm:$0xff]
      %v212 = vld [vmem:[%s193 + $0x58] sm:$0xff]
      %v213 = vld [vmem:[%s193 + $0x60] sm:$0xff]
      %v214 = vld [vmem:[%s193 + $0x68] sm:$0xff]
      %v215 = vld [vmem:[%s193 + $0x70] sm:$0xff]
      %v216 = vld [vmem:[%s193 + $0x78] sm:$0xff]
      %v217 = vld [vmem:[%s193 + $0x80] sm:$0xff]
      %v218 = vld [vmem:[%s193 + $0x88] sm:$0xff]
      %v219 = vld [vmem:[%s193 + $0x90] sm:$0xff]
      %v220 = vld [vmem:[%s193 + $0x98] sm:$0xff]
      %v221 = vld [vmem:[%s193 + $0xa0] sm:$0xff]
      %v222 = vld [vmem:[%s193 + $0xa8] sm:$0xff]
      %v223 = vld [vmem:[%s193 + $0xb0] sm:$0xff]
      %v224 = vld [vmem:[%s193 + $0xb8] sm:$0xff]
      %v225 = vld [vmem:[%s193 + $0xc0] sm:$0xff]
      %v226 = vld [vmem:[%s193 + $0xc8] sm:$0xff]
      %v227 = vld [vmem:[%s193 + $0xd0] sm:$0xff]
      %v228 = vld [vmem:[%s193 + $0xd8] sm:$0xff]
      %v229 = vld [vmem:[%s193 + $0xe0] sm:$0xff]
      %v230 = vld [vmem:[%s193 + $0xe8] sm:$0xff]
      %v231 = vld [vmem:[%s193 + $0xf0] sm:$0xff]
      %v232 = vld [vmem:[%s193 + $0xf8] sm:$0xff]
      %v233 = vld [vmem:[%s1] sm:$0xf]
      %vm234 = vcmask 31744
      %v236 = vsel %vm234, %v201, 0
      %v239 = vsel %vm234, %v202, 0
      %v242 = vsel %vm234, %v203, 0
      %v245 = vsel %vm234, %v204, 0
      %v248 = vsel %vm234, %v205, 0
      %v251 = vsel %vm234, %v206, 0
      %v254 = vsel %vm234, %v207, 0
      %v257 = vsel %vm234, %v208, 0
      %v260 = vsel %vm234, %v209, 0
      %v263 = vsel %vm234, %v210, 0
      %v266 = vsel %vm234, %v211, 0
      %v269 = vsel %vm234, %v212, 0
      %v272 = vsel %vm234, %v213, 0
      %v275 = vsel %vm234, %v214, 0
      %v278 = vsel %vm234, %v215, 0
      %v281 = vsel %vm234, %v216, 0
      %v284 = vsel %vm234, %v217, 0
      %v287 = vsel %vm234, %v218, 0
      %v290 = vsel %vm234, %v219, 0
      %v293 = vsel %vm234, %v220, 0
      %v296 = vsel %vm234, %v221, 0
      %v299 = vsel %vm234, %v222, 0
      %v302 = vsel %vm234, %v223, 0
      %v305 = vsel %vm234, %v224, 0
      %v308 = vsel %vm234, %v225, 0
      %v311 = vsel %vm234, %v226, 0
      %v314 = vsel %vm234, %v227, 0
      %v317 = vsel %vm234, %v228, 0
      %v320 = vsel %vm234, %v229, 0
      %v323 = vsel %vm234, %v230, 0
      %v326 = vsel %vm234, %v231, 0
      %v329 = vsel %vm234, %v232, 0
      %vm331 = vcmask 1043456
      %v333 = vsel %vm331, %v233, 0
      %335 = vmatprep.subr.mxu0 0.0
      %336 = vmatpush1.msra.mxu0 %v333
      %337 = vmatprep.subr.mxu0 0.0
      %338 = vmatpush1.msra.mxu0 0.0
      %339 = vmatprep.subr.mxu0 0.0
      %340 = vmatpush1.msra.mxu0 0.0
      %341 = vmatprep.subr.mxu0 0.0
      %342 = vmatpush1.msra.mxu0 0.0
      %343 = vmatprep.subr.mxu0 0.0
      %344 = vmatpush1.msra.mxu0 0.0
      %345 = vmatprep.subr.mxu0 0.0
      %346 = vmatpush1.msra.mxu0 0.0
      %347 = vmatprep.subr.mxu0 0.0
      %348 = vmatpush1.msra.mxu0 0.0
      %349 = vmatprep.subr.mxu0 0.0
      %350 = vmatpush1.msra.mxu0 0.0
      %351 = vmatprep.subr.mxu0 0.0
      %352 = vmatpush1.msra.mxu0 0.0
      %353 = vmatprep.subr.mxu0 0.0
      %354 = vmatpush1.msra.mxu0 0.0
      %355 = vmatprep.subr.mxu0 0.0
      %356 = vmatpush1.msra.mxu0 0.0
      %357 = vmatprep.subr.mxu0 0.0
      %358 = vmatpush1.msra.mxu0 0.0
      %359 = vmatprep.subr.mxu0 0.0
      %360 = vmatpush1.msra.mxu0 0.0
      %361 = vmatprep.subr.mxu0 0.0
      %362 = vmatpush1.msra.mxu0 0.0
      %363 = vmatprep.subr.mxu0 0.0
      %364 = vmatpush1.msra.mxu0 0.0
      %365 = vmatprep.subr.mxu0 0.0
      %366 = vmatpush1.msra.mxu0 0.0
      %367 = vmatprep.subr.mxu0 0.0
      %368 = vmatpush1.msra.mxu0 0.0
      %369 = vmatprep.subr.mxu0 0.0
      %370 = vmatpush1.msra.mxu0 0.0
      %371 = vmatprep.subr.mxu0 0.0
      %372 = vmatpush1.msra.mxu0 0.0
      %373 = vmatprep.subr.mxu0 0.0
      %374 = vmatpush1.msra.mxu0 0.0
      %375 = vmatprep.subr.mxu0 0.0
      %376 = vmatpush1.msra.mxu0 0.0
      %377 = vmatprep.subr.mxu0 0.0
      %378 = vmatpush1.msra.mxu0 0.0
      %379 = vmatprep.subr.mxu0 0.0
      %380 = vmatpush1.msra.mxu0 0.0
      %381 = vmatprep.subr.mxu0 0.0
      %382 = vmatpush1.msra.mxu0 0.0
      %383 = vmatprep.subr.mxu0 0.0
      %384 = vmatpush1.msra.mxu0 0.0
      %385 = vmatprep.subr.mxu0 0.0
      %386 = vmatpush1.msra.mxu0 0.0
      %387 = vmatprep.subr.mxu0 0.0
      %388 = vmatpush1.msra.mxu0 0.0
      %389 = vmatprep.subr.mxu0 0.0
      %390 = vmatpush1.msra.mxu0 0.0
      %391 = vmatprep.subr.mxu0 0.0
      %392 = vmatpush1.msra.mxu0 0.0
      %393 = vmatprep.subr.mxu0 0.0
      %394 = vmatpush1.msra.mxu0 0.0
      %395 = vmatprep.subr.mxu0 0.0
      %396 = vmatpush1.msra.mxu0 0.0
      %397 = vmatprep.subr.mxu0 0.0
      %398 = vmatpush1.msra.mxu0 0.0
      %399 = vmatprep.mubr.f32.mxu0 0.0
      %400 = vmatmul.mubr.f32.gmra.mrb[0].mxu0 %v236
      %v401 = vpop.f32.mrb[0].mxu0
      %v402 = vadd.f32 0.0, %v401
      %v403 = vpop.f32.mrb[0].mxu0
      %404 = vmatprep.mubr.f32.mxu0 0.0
      %405 = vmatmul.mubr.f32.gmra.mrb[0].mxu0 %v239
      %v406 = vpop.f32.mrb[0].mxu0
      %v407 = vadd.f32 0.0, %v406
      %v408 = vpop.f32.mrb[0].mxu0
      %409 = vmatprep.mubr.f32.mxu0 0.0
      %410 = vmatmul.mubr.f32.gmra.mrb[0].mxu0 %v242
      %v411 = vpop.f32.mrb[0].mxu0
      %v412 = vadd.f32 0.0, %v411
      %v413 = vpop.f32.mrb[0].mxu0
      %414 = vmatprep.mubr.f32.mxu0 0.0
      %415 = vmatmul.mubr.f32.gmra.mrb[0].mxu0 %v245
      %v416 = vpop.f32.mrb[0].mxu0
      %v417 = vadd.f32 0.0, %v416
      %v418 = vpop.f32.mrb[0].mxu0
      %419 = vmatprep.mubr.f32.mxu0 0.0
      %420 = vmatmul.mubr.f32.gmra.mrb[0].mxu0 %v248
      %v421 = vpop.f32.mrb[0].mxu0
      %v422 = vadd.f32 0.0, %v421
      %v423 = vpop.f32.mrb[0].mxu0
      %424 = vmatprep.mubr.f32.mxu0 0.0
      %425 = vmatmul.mubr.f32.gmra.mrb[0].mxu0 %v251
      %v426 = vpop.f32.mrb[0].mxu0
      %v427 = vadd.f32 0.0, %v426
      %v428 = vpop.f32.mrb[0].mxu0
      %429 = vmatprep.mubr.f32.mxu0 0.0
      %430 = vmatmul.mubr.f32.gmra.mrb[0].mxu0 %v254
      %v431 = vpop.f32.mrb[0].mxu0
      %v432 = vadd.f32 0.0, %v431
      %v433 = vpop.f32.mrb[0].mxu0
      %434 = vmatprep.mubr.f32.mxu0 0.0
      %435 = vmatmul.mubr.f32.gmra.mrb[0].mxu0 %v257
      %v436 = vpop.f32.mrb[0].mxu0
      %v437 = vadd.f32 0.0, %v436
      %v438 = vpop.f32.mrb[0].mxu0
      %439 = vmatprep.mubr.f32.mxu0 0.0
      %440 = vmatmul.mubr.f32.gmra.mrb[0].mxu0 %v260
      %v441 = vpop.f32.mrb[0].mxu0
      %v442 = vadd.f32 0.0, %v441
      %v443 = vpop.f32.mrb[0].mxu0
      %444 = vmatprep.mubr.f32.mxu0 0.0
      %445 = vmatmul.mubr.f32.gmra.mrb[0].mxu0 %v263
      %v446 = vpop.f32.mrb[0].mxu0
      %v447 = vadd.f32 0.0, %v446
      %v448 = vpop.f32.mrb[0].mxu0
      %449 = vmatprep.mubr.f32.mxu0 0.0
      %450 = vmatmul.mubr.f32.gmra.mrb[0].mxu0 %v266
      %v451 = vpop.f32.mrb[0].mxu0
      %v452 = vadd.f32 0.0, %v451
      %v453 = vpop.f32.mrb[0].mxu0
      %454 = vmatprep.mubr.f32.mxu0 0.0
      %455 = vmatmul.mubr.f32.gmra.mrb[0].mxu0 %v269
      %v456 = vpop.f32.mrb[0].mxu0
      %v457 = vadd.f32 0.0, %v456
      %v458 = vpop.f32.mrb[0].mxu0
      %459 = vmatprep.mubr.f32.mxu0 0.0
      %460 = vmatmul.mubr.f32.gmra.mrb[0].mxu0 %v272
      %v461 = vpop.f32.mrb[0].mxu0
      %v462 = vadd.f32 0.0, %v461
      %v463 = vpop.f32.mrb[0].mxu0
      %464 = vmatprep.mubr.f32.mxu0 0.0
      %465 = vmatmul.mubr.f32.gmra.mrb[0].mxu0 %v275
      %v466 = vpop.f32.mrb[0].mxu0
      %v467 = vadd.f32 0.0, %v466
      %v468 = vpop.f32.mrb[0].mxu0
      %469 = vmatprep.mubr.f32.mxu0 0.0
      %470 = vmatmul.mubr.f32.gmra.mrb[0].mxu0 %v278
      %v471 = vpop.f32.mrb[0].mxu0
      %v472 = vadd.f32 0.0, %v471
      %v473 = vpop.f32.mrb[0].mxu0
      %474 = vmatprep.mubr.f32.mxu0 0.0
      %475 = vmatmul.mubr.f32.gmra.mrb[0].mxu0 %v281
      %v476 = vpop.f32.mrb[0].mxu0
      %v477 = vadd.f32 0.0, %v476
      %v478 = vpop.f32.mrb[0].mxu0
      %479 = vmatprep.mubr.f32.mxu0 0.0
      %480 = vmatmul.mubr.f32.gmra.mrb[0].mxu0 %v284
      %v481 = vpop.f32.mrb[0].mxu0
      %v482 = vadd.f32 0.0, %v481
      %v483 = vpop.f32.mrb[0].mxu0
      %484 = vmatprep.mubr.f32.mxu0 0.0
      %485 = vmatmul.mubr.f32.gmra.mrb[0].mxu0 %v287
      %v486 = vpop.f32.mrb[0].mxu0
      %v487 = vadd.f32 0.0, %v486
      %v488 = vpop.f32.mrb[0].mxu0
      %489 = vmatprep.mubr.f32.mxu0 0.0
      %490 = vmatmul.mubr.f32.gmra.mrb[0].mxu0 %v290
      %v491 = vpop.f32.mrb[0].mxu0
      %v492 = vadd.f32 0.0, %v491
      %v493 = vpop.f32.mrb[0].mxu0
      %494 = vmatprep.mubr.f32.mxu0 0.0
      %495 = vmatmul.mubr.f32.gmra.mrb[0].mxu0 %v293
      %v496 = vpop.f32.mrb[0].mxu0
      %v497 = vadd.f32 0.0, %v496
      %v498 = vpop.f32.mrb[0].mxu0
      %499 = vmatprep.mubr.f32.mxu0 0.0
      %500 = vmatmul.mubr.f32.gmra.mrb[0].mxu0 %v296
      %v501 = vpop.f32.mrb[0].mxu0
      %v502 = vadd.f32 0.0, %v501
      %v503 = vpop.f32.mrb[0].mxu0
      %504 = vmatprep.mubr.f32.mxu0 0.0
      %505 = vmatmul.mubr.f32.gmra.mrb[0].mxu0 %v299
      %v506 = vpop.f32.mrb[0].mxu0
      %v507 = vadd.f32 0.0, %v506
      %v508 = vpop.f32.mrb[0].mxu0
      %509 = vmatprep.mubr.f32.mxu0 0.0
      %510 = vmatmul.mubr.f32.gmra.mrb[0].mxu0 %v302
      %v511 = vpop.f32.mrb[0].mxu0
      %v512 = vadd.f32 0.0, %v511
      %v513 = vpop.f32.mrb[0].mxu0
      %514 = vmatprep.mubr.f32.mxu0 0.0
      %515 = vmatmul.mubr.f32.gmra.mrb[0].mxu0 %v305
      %v516 = vpop.f32.mrb[0].mxu0
      %v517 = vadd.f32 0.0, %v516
      %v518 = vpop.f32.mrb[0].mxu0
      %519 = vmatprep.mubr.f32.mxu0 0.0
      %520 = vmatmul.mubr.f32.gmra.mrb[0].mxu0 %v308
      %v521 = vpop.f32.mrb[0].mxu0
      %v522 = vadd.f32 0.0, %v521
      %v523 = vpop.f32.mrb[0].mxu0
      %524 = vmatprep.mubr.f32.mxu0 0.0
      %525 = vmatmul.mubr.f32.gmra.mrb[0].mxu0 %v311
      %v526 = vpop.f32.mrb[0].mxu0
      %v527 = vadd.f32 0.0, %v526
      %v528 = vpop.f32.mrb[0].mxu0
      %529 = vmatprep.mubr.f32.mxu0 0.0
      %530 = vmatmul.mubr.f32.gmra.mrb[0].mxu0 %v314
      %v531 = vpop.f32.mrb[0].mxu0
      %v532 = vadd.f32 0.0, %v531
      %v533 = vpop.f32.mrb[0].mxu0
      %534 = vmatprep.mubr.f32.mxu0 0.0
      %535 = vmatmul.mubr.f32.gmra.mrb[0].mxu0 %v317
      %v536 = vpop.f32.mrb[0].mxu0
      %v537 = vadd.f32 0.0, %v536
      %v538 = vpop.f32.mrb[0].mxu0
      %539 = vmatprep.mubr.f32.mxu0 0.0
      %540 = vmatmul.mubr.f32.gmra.mrb[0].mxu0 %v320
      %v541 = vpop.f32.mrb[0].mxu0
      %v542 = vadd.f32 0.0, %v541
      %v543 = vpop.f32.mrb[0].mxu0
      %544 = vmatprep.mubr.f32.mxu0 0.0
      %545 = vmatmul.mubr.f32.gmra.mrb[0].mxu0 %v323
      %v546 = vpop.f32.mrb[0].mxu0
      %v547 = vadd.f32 0.0, %v546
      %v548 = vpop.f32.mrb[0].mxu0
      %549 = vmatprep.mubr.f32.mxu0 0.0
      %550 = vmatmul.mubr.f32.gmra.mrb[0].mxu0 %v326
      %v551 = vpop.f32.mrb[0].mxu0
      %v552 = vadd.f32 0.0, %v551
      %v553 = vpop.f32.mrb[0].mxu0
      %554 = vmatprep.mubr.f32.mxu0 0.0
      %555 = vmatmul.mubr.f32.gmra.mrb[0].mxu0 %v329
      %v556 = vpop.f32.mrb[0].mxu0
      %v557 = vadd.f32 0.0, %v556
      %v558 = vpop.f32.mrb[0].mxu0
      %559 = vdwg.mxu0
      %v560 = vld [vmem:[%s2] sm:$0x1]
      %v562 = vlaneseq
      %v563 = vshrl.u32 %v562, 7
      %v564 = vsub.s32 0, %v563
      %v565 = vrot.slane %v560, %v564
      %v567 = vmul.f32 %v402, %v565
      %v568 = vmul.f32 %v407, %v565
      %v569 = vmul.f32 %v412, %v565
      %v570 = vmul.f32 %v417, %v565
      %v571 = vmul.f32 %v422, %v565
      %v572 = vmul.f32 %v427, %v565
      %v573 = vmul.f32 %v432, %v565
      %v574 = vmul.f32 %v437, %v565
      %v575 = vmul.f32 %v442, %v565
      %v576 = vmul.f32 %v447, %v565
      %v577 = vmul.f32 %v452, %v565
      %v578 = vmul.f32 %v457, %v565
      %v579 = vmul.f32 %v462, %v565
      %v580 = vmul.f32 %v467, %v565
      %v581 = vmul.f32 %v472, %v565
      %v582 = vmul.f32 %v477, %v565
      %v583 = vmul.f32 %v482, %v565
      %v584 = vmul.f32 %v487, %v565
      %v585 = vmul.f32 %v492, %v565
      %v586 = vmul.f32 %v497, %v565
      %v587 = vmul.f32 %v502, %v565
      %v588 = vmul.f32 %v507, %v565
      %v589 = vmul.f32 %v512, %v565
      %v590 = vmul.f32 %v517, %v565
      %v591 = vmul.f32 %v522, %v565
      %v592 = vmul.f32 %v527, %v565
      %v593 = vmul.f32 %v532, %v565
      %v594 = vmul.f32 %v537, %v565
      %v595 = vmul.f32 %v542, %v565
      %v596 = vmul.f32 %v547, %v565
      %v597 = vmul.f32 %v552, %v565
      %v598 = vmul.f32 %v557, %v565
      %v599 = vld [vmem:[%s3] sm:$0x1]
      %v601 = vlaneseq
      %v602 = vshrl.u32 %v601, 7
      %v603 = vsub.s32 0, %v602
      %v604 = vrot.slane %v599, %v603
      %v606 = vadd.f32 %v567, %v604
      %v607 = vadd.f32 %v568, %v604
      %v608 = vadd.f32 %v569, %v604
      %v609 = vadd.f32 %v570, %v604
      %v610 = vadd.f32 %v571, %v604
      %v611 = vadd.f32 %v572, %v604
      %v612 = vadd.f32 %v573, %v604
      %v613 = vadd.f32 %v574, %v604
      %v614 = vadd.f32 %v575, %v604
      %v615 = vadd.f32 %v576, %v604
      %v616 = vadd.f32 %v577, %v604
      %v617 = vadd.f32 %v578, %v604
      %v618 = vadd.f32 %v579, %v604
      %v619 = vadd.f32 %v580, %v604
      %v620 = vadd.f32 %v581, %v604
      %v621 = vadd.f32 %v582, %v604
      %v622 = vadd.f32 %v583, %v604
      %v623 = vadd.f32 %v584, %v604
      %v624 = vadd.f32 %v585, %v604
      %v625 = vadd.f32 %v586, %v604
      %v626 = vadd.f32 %v587, %v604
      %v627 = vadd.f32 %v588, %v604
      %v628 = vadd.f32 %v589, %v604
      %v629 = vadd.f32 %v590, %v604
      %v630 = vadd.f32 %v591, %v604
      %v631 = vadd.f32 %v592, %v604
      %v632 = vadd.f32 %v593, %v604
      %v633 = vadd.f32 %v594, %v604
      %v634 = vadd.f32 %v595, %v604
      %v635 = vadd.f32 %v596, %v604
      %v636 = vadd.f32 %v597, %v604
      %v637 = vadd.f32 %v598, %v604
      %v638 = vmax.f32 %v606, 0.0
      %v639 = vmax.f32 %v607, 0.0
      %v640 = vmax.f32 %v608, 0.0
      %v641 = vmax.f32 %v609, 0.0
      %v642 = vmax.f32 %v610, 0.0
      %v643 = vmax.f32 %v611, 0.0
      %v644 = vmax.f32 %v612, 0.0
      %v645 = vmax.f32 %v613, 0.0
      %v646 = vmax.f32 %v614, 0.0
      %v647 = vmax.f32 %v615, 0.0
      %v648 = vmax.f32 %v616, 0.0
      %v649 = vmax.f32 %v617, 0.0
      %v650 = vmax.f32 %v618, 0.0
      %v651 = vmax.f32 %v619, 0.0
      %v652 = vmax.f32 %v620, 0.0
      %v653 = vmax.f32 %v621, 0.0
      %v654 = vmax.f32 %v622, 0.0
      %v655 = vmax.f32 %v623, 0.0
      %v656 = vmax.f32 %v624, 0.0
      %v657 = vmax.f32 %v625, 0.0
      %v658 = vmax.f32 %v626, 0.0
      %v659 = vmax.f32 %v627, 0.0
      %v660 = vmax.f32 %v628, 0.0
      %v661 = vmax.f32 %v629, 0.0
      %v662 = vmax.f32 %v630, 0.0
      %v663 = vmax.f32 %v631, 0.0
      %v664 = vmax.f32 %v632, 0.0
      %v665 = vmax.f32 %v633, 0.0
      %v666 = vmax.f32 %v634, 0.0
      %v667 = vmax.f32 %v635, 0.0
      %v668 = vmax.f32 %v636, 0.0
      %v669 = vmax.f32 %v637, 0.0
      %v670 = vmin.f32 %v638, 6.0
      %v671 = vmin.f32 %v639, 6.0
      %v672 = vmin.f32 %v640, 6.0
      %v673 = vmin.f32 %v641, 6.0
      %v674 = vmin.f32 %v642, 6.0
      %v675 = vmin.f32 %v643, 6.0
      %v676 = vmin.f32 %v644, 6.0
      %v677 = vmin.f32 %v645, 6.0
      %v678 = vmin.f32 %v646, 6.0
      %v679 = vmin.f32 %v647, 6.0
      %v680 = vmin.f32 %v648, 6.0
      %v681 = vmin.f32 %v649, 6.0
      %v682 = vmin.f32 %v650, 6.0
      %v683 = vmin.f32 %v651, 6.0
      %v684 = vmin.f32 %v652, 6.0
      %v685 = vmin.f32 %v653, 6.0
      %v686 = vmin.f32 %v654, 6.0
      %v687 = vmin.f32 %v655, 6.0
      %v688 = vmin.f32 %v656, 6.0
      %v689 = vmin.f32 %v657, 6.0
      %v690 = vmin.f32 %v658, 6.0
      %v691 = vmin.f32 %v659, 6.0
      %v692 = vmin.f32 %v660, 6.0
      %v693 = vmin.f32 %v661, 6.0
      %v694 = vmin.f32 %v662, 6.0
      %v695 = vmin.f32 %v663, 6.0
      %v696 = vmin.f32 %v664, 6.0
      %v697 = vmin.f32 %v665, 6.0
      %v698 = vmin.f32 %v666, 6.0
      %v699 = vmin.f32 %v667, 6.0
      %v700 = vmin.f32 %v668, 6.0
      %v701 = vmin.f32 %v669, 6.0
      %vm702 = vcmask 64512
      %703 = vst.msk [vmem:[%s199] sm:$0xff] %vm702, %v670
      %704 = vst.msk [vmem:[%s199 + $0x8] sm:$0xff] %vm702, %v671
      %705 = vst.msk [vmem:[%s199 + $0x10] sm:$0xff] %vm702, %v672
      %706 = vst.msk [vmem:[%s199 + $0x18] sm:$0xff] %vm702, %v673
      %707 = vst.msk [vmem:[%s199 + $0x20] sm:$0xff] %vm702, %v674
      %708 = vst.msk [vmem:[%s199 + $0x28] sm:$0xff] %vm702, %v675
      %709 = vst.msk [vmem:[%s199 + $0x30] sm:$0xff] %vm702, %v676
      %710 = vst.msk [vmem:[%s199 + $0x38] sm:$0xff] %vm702, %v677
      %711 = vst.msk [vmem:[%s199 + $0x40] sm:$0xff] %vm702, %v678
      %712 = vst.msk [vmem:[%s199 + $0x48] sm:$0xff] %vm702, %v679
      %713 = vst.msk [vmem:[%s199 + $0x50] sm:$0xff] %vm702, %v680
      %714 = vst.msk [vmem:[%s199 + $0x58] sm:$0xff] %vm702, %v681
      %715 = vst.msk [vmem:[%s199 + $0x60] sm:$0xff] %vm702, %v682
      %716 = vst.msk [vmem:[%s199 + $0x68] sm:$0xff] %vm702, %v683
      %717 = vst.msk [vmem:[%s199 + $0x70] sm:$0xff] %vm702, %v684
      %718 = vst.msk [vmem:[%s199 + $0x78] sm:$0xff] %vm702, %v685
      %719 = vst.msk [vmem:[%s199 + $0x80] sm:$0xff] %vm702, %v686
      %720 = vst.msk [vmem:[%s199 + $0x88] sm:$0xff] %vm702, %v687
      %721 = vst.msk [vmem:[%s199 + $0x90] sm:$0xff] %vm702, %v688
      %722 = vst.msk [vmem:[%s199 + $0x98] sm:$0xff] %vm702, %v689
      %723 = vst.msk [vmem:[%s199 + $0xa0] sm:$0xff] %vm702, %v690
      %724 = vst.msk [vmem:[%s199 + $0xa8] sm:$0xff] %vm702, %v691
      %725 = vst.msk [vmem:[%s199 + $0xb0] sm:$0xff] %vm702, %v692
      %726 = vst.msk [vmem:[%s199 + $0xb8] sm:$0xff] %vm702, %v693
      %727 = vst.msk [vmem:[%s199 + $0xc0] sm:$0xff] %vm702, %v694
      %728 = vst.msk [vmem:[%s199 + $0xc8] sm:$0xff] %vm702, %v695
      %729 = vst.msk [vmem:[%s199 + $0xd0] sm:$0xff] %vm702, %v696
      %730 = vst.msk [vmem:[%s199 + $0xd8] sm:$0xff] %vm702, %v697
      %731 = vst.msk [vmem:[%s199 + $0xe0] sm:$0xff] %vm702, %v698
      %732 = vst.msk [vmem:[%s199 + $0xe8] sm:$0xff] %vm702, %v699
      %733 = vst.msk [vmem:[%s199 + $0xf0] sm:$0xff] %vm702, %v700
      %734 = vst.msk [vmem:[%s199 + $0xf8] sm:$0xff] %vm702, %v701
      %s735 = smul.u32 32, %s15
      %p736 = scmp.lt.s32.totalorder %s735, 63
      %s737 = scalar_select %p736, %s735, 63
      %s738 = smul.addr %s737, 8
      %s739 = scalar_lea.vmem %s4, %s738
      // Predicated region
      $region37: #{tpu_custom_call.1} parent=35 // pred_check
        %p740 = pneg %p122
      $region38: #{tpu_custom_call.1} parent=35 // pred_check_branch
        %742 = sbr.rel (%p740) target = $region40
      $region39: #{tpu_custom_call.1} parent=35 // pred_region
        %s743 = smul.u32 32, %s15
      $region40: #{tpu_custom_call.1} parent=35 // pred_fallthru
        _
    $region36: #{tpu_custom_call.1} parent=5 // pred_fallthru
      _
    %p744 = scmp.le.s32.totalorder 2, %s10
    // Predicated region
    $region41: #{tpu_custom_call.1} parent=5 // pred_check
      %p745 = pneg %p744
    $region42: #{tpu_custom_call.1} parent=5 // pred_check_branch
      %747 = sbr.rel (%p745) target = $region44
    $region43: #{tpu_custom_call.1} parent=5 // pred_region
      %s748 = ssub.s32 %s10, 2
      // Predicated region
      $region45: #{tpu_custom_call.1} parent=43 // pred_check
        %p749 = pneg %p128
      $region46: #{tpu_custom_call.1} parent=43 // pred_check_branch
        %751 = sbr.rel (%p749) target = $region48
      $region47: #{tpu_custom_call.1} parent=43 // pred_region
        %s752 = smul.u32 32, %s16
        %p753 = scmp.lt.s32.totalorder %s752, 63
        %s754 = scalar_select %p753, %s752, 63
        %s755 = smul.addr %s754, 8
        %s756 = scalar_lea.vmem %s4, %s755
      $region48: #{tpu_custom_call.1} parent=43 // pred_fallthru
        _
    $region44: #{tpu_custom_call.1} parent=5 // pred_fallthru
      _
  $region6: #{tpu_custom_call.1} parent=0 // loop_footer
    %s14 = sadd.s32 1, %s10
  $region7: #{tpu_custom_call.1} parent=0 // loop_footer_branch
    %9 = sbr.rel target = $region3
  $region8: #{tpu_custom_call.1} parent=0 // loop_exit
    _

</llo_original>
